<compile_context>
chip_gen: v5e
topology: v5e:2x2
jax: 0.10.0
libtpu: 0.0.40
codegen_flags: <defaults>
</compile_context>

<pallas_src>
import functools
import numpy as np
import jax
import jax.numpy as jnp
from jax.experimental import pallas as pl
from jax.experimental.pallas import tpu as pltpu


def _round_up(x, m):
    return ((x + m - 1) // m) * m


def _cdiv(a, b):
    return (a + b - 1) // b


def _g1515_kernel(x_ref, w_ref, shift_ref, o_ref, *, threshold, factor):
    # x_ref block: (1, 3, TILE) f32 (RGB on sublanes, spatial on lanes).
    # w_ref: (c2, 3) conv weight with BN scale folded in.  shift_ref: (c2, 1).
    x = x_ref[0]                              # (3, TILE)
    r = x[0:1, :]                             # (1, TILE)
    g = x[1:2, :]                             # (1, TILE)

    # mask = (g - r > thr).half() * factor ; mask[mask == 0] = 1
    # `factor` was rounded through fp16 on the host (0/1 are exact in fp16), so
    # this fp32 `where` matches the PyTorch half-precision round-trip.
    mask = jnp.where((g - r) > threshold,
                     jnp.float32(factor), jnp.float32(1.0))   # (1, TILE)
    y = x * mask                              # (3, TILE) adjusted r/g/b

    # 1x1 conv (bias-free) with BN scale folded into the weight.  M=c2, K=3
    # under-utilizes the MXU, but the kernel is HBM-bound so this sits entirely
    # off the critical path.
    out = jnp.dot(w_ref[...], y, preferred_element_type=jnp.float32)  # (c2, TILE)
    out = out + shift_ref[...]

    # SiLU
    o_ref[0] = out * jax.nn.sigmoid(out)


def _pick_tile(HW, B, c2):
    """Lane-tile selection: multi-MiB steps, balanced tiles, >=2 tiles if B==1."""
    hw128 = _round_up(max(HW, 1), 128)
    # Per-step HBM bytes ~ (8 + round_up(c2,8)) * 4 * tile (x rows are
    # sublane-padded 3->8).  Target ~4 MiB per step, cap tile at 64K lanes.
    rows = 8 + _round_up(c2, 8)
    max_tile = max(128, min(1 << 16, _round_up((4 << 20) // (rows * 4), 128)))
    n_tiles = _cdiv(hw128, max_tile)
    # Keep >=2 lane tiles when the batch alone can't feed both v7x TensorCores.
    if B * n_tiles < 2 and hw128 >= 256:
        n_tiles = 2
    tile = _round_up(_cdiv(hw128, n_tiles), 128)   # balanced; <=127 pad lanes/tile
    return tile


@functools.partial(jax.jit, static_argnames=("threshold", "factor", "eps"))
def _g1515_impl(x_nchw, conv_w, bn_gamma, bn_beta, bn_mean, bn_var,
                *, threshold, factor, eps):
    B, C, H, W = x_nchw.shape
    assert C == 3, "G1515 consumes exactly the 3 RGB channels; conv expects c1=3"
    c2 = conv_w.shape[0]
    HW = H * W

    tile = _pick_tile(HW, B, c2)
    grid = (B, _cdiv(HW, tile))

    # Free metadata reshape (no copy): (B, 3, H, W) -> (B, 3, HW).  No host-side
    # padding: Pallas pads the trailing partial lane block on read and drops the
    # out-of-bounds part of the writeback.
    x_flat = x_nchw.reshape(B, 3, HW).astype(jnp.float32)

    # conv_w from Conv2d(3, c2, k=1): (c2, 3, 1, 1) -> (c2, 3).  Fold inference
    # BatchNorm as y*scale + shift, with the scale pushed into the weight.
    w2d = conv_w.reshape(c2, 3).astype(jnp.float32)
    scale = (bn_gamma / jnp.sqrt(bn_var + eps)).astype(jnp.float32)   # (c2,)
    shift = (bn_beta - bn_mean * scale).astype(jnp.float32)           # (c2,)
    w_scaled = w2d * scale[:, None]                                   # (c2, 3)
    shift2d = shift.reshape(c2, 1)                                    # (c2, 1)

    # VMEM budget: double-buffered I/O blocks + a few tile-wide intermediates.
    c2_rows = _round_up(c2, 8)
    x_blk = 8 * tile * 4
    o_blk = c2_rows * tile * 4
    vmem_limit = min(2 * (x_blk + o_blk) + 3 * x_blk + 3 * o_blk + (2 << 20),
                     56 << 20)

    kernel = functools.partial(_g1515_kernel, threshold=threshold, factor=factor)

    out_flat = pl.pallas_call(
        kernel,
        out_shape=jax.ShapeDtypeStruct((B, c2, HW), jnp.float32),
        grid_spec=pltpu.PrefetchScalarGridSpec(
            num_scalar_prefetch=0,
            grid=grid,
            in_specs=[
                pl.BlockSpec((1, 3, tile), lambda b, t: (b, 0, t)),
                pl.BlockSpec((c2, 3), lambda b, t: (0, 0)),
                pl.BlockSpec((c2, 1), lambda b, t: (0, 0)),
            ],
            out_specs=pl.BlockSpec((1, c2, tile), lambda b, t: (b, 0, t)),
        ),
        compiler_params=pltpu.CompilerParams(
            dimension_semantics=("parallel", "parallel"),
            vmem_limit_bytes=int(vmem_limit)),
    )(x_flat, w_scaled, shift2d)

    return out_flat.reshape(B, c2, H, W)


def g1515_forward(x_nchw, conv_w, bn_gamma, bn_beta, bn_mean, bn_var,
                  threshold=0.0588, factor=1.5, eps=1e-5):
    # PyTorch builds the mask in half precision: round `factor` through fp16.
    factor_h = float(np.float16(factor))
    if factor_h == 0.0:
        # mask * 0 == 0 everywhere -> PyTorch then resets all zeros to 1.
        factor_h = 1.0
    return _g1515_impl(x_nchw, conv_w, bn_gamma, bn_beta, bn_mean, bn_var,
                       threshold=float(threshold), factor=factor_h,
                       eps=float(eps))


def _reference(x, conv_w, gamma, beta, mean, var,
               threshold=0.0588, factor=1.5, eps=1e-5):
    r = x[:, 0, :, :]
    g = x[:, 1, :, :]
    factor_h = float(np.float16(factor))
    if factor_h == 0.0:
        factor_h = 1.0
    mask = jnp.where((g - r) > threshold, factor_h, 1.0)
    y = x * mask[:, None, :, :]
    w = conv_w.reshape(conv_w.shape[0], 3)
    out = jnp.einsum('oc,bchw->bohw', w, y)
    scale = gamma / jnp.sqrt(var + eps)
    out = out * scale[None, :, None, None] + (beta - mean * scale)[None, :, None, None]
    return out * jax.nn.sigmoid(out)


def _run_case(key, B, C2, H, W):
    k_x, k_w, k_g, k_b, k_m, k_v = jax.random.split(key, 6)
    x = jax.random.normal(k_x, (B, 3, H, W), dtype=jnp.float32) * 0.5
    conv_w = jax.random.normal(k_w, (C2, 3, 1, 1), dtype=jnp.float32) * 0.3
    bn_gamma = 1.0 + 0.1 * jax.random.normal(k_g, (C2,), dtype=jnp.float32)
    bn_beta = 0.1 * jax.random.normal(k_b, (C2,), dtype=jnp.float32)
    bn_mean = 0.05 * jax.random.normal(k_m, (C2,), dtype=jnp.float32)
    bn_var = jnp.abs(1.0 + 0.1 * jax.random.normal(k_v, (C2,), dtype=jnp.float32))

    out = g1515_forward(x, conv_w, bn_gamma, bn_beta, bn_mean, bn_var)
    out = jax.block_until_ready(out)
    ref = _reference(x, conv_w, bn_gamma, bn_beta, bn_mean, bn_var)
    assert out.shape == (B, C2, H, W)
    assert jnp.allclose(out, ref, atol=2e-5, rtol=2e-5), \
        f"mismatch vs reference (B={B}, C2={C2}, H={H}, W={W})"


if __name__ == "__main__":
    key = jax.random.PRNGKey(0)
    k1, k2, k3, k4 = jax.random.split(key, 4)

    # Main case: aligned c2 and HW (single lane tile per batch element).
    _run_case(k1, B=2, C2=8, H=16, W=16)

    # Unaligned c2 (=5) and HW (=100 < 128): partial trailing lane block with
    # dropped out-of-bounds writes, no host-side pad/slice.
    _run_case(k2, B=1, C2=5, H=10, W=10)

    # B==1 path: lane axis split into >=2 balanced tiles (v7x megacore).
    _run_case(k3, B=1, C2=8, H=48, W=48)

    # Ragged HW (37*53=1961): multiple tiles plus a partial trailing block.
    _run_case(k4, B=1, C2=3, H=37, W=53)

    # TODO(synk): BatchNorm is folded with running statistics (inference mode);
    # training-mode batch statistics are not reproduced.

    print("KERNEL_OK")
</pallas_src>

<mosaic_0001>
module attributes {stable_mosaic.version = 11 : i64} {
  func.func @_g1515_kernel(%arg0: i32, %arg1: i32, %arg2: memref<1x3x256xf32, #tpu.memory_space<vmem>>, %arg3: memref<8x3xf32, #tpu.memory_space<vmem>>, %arg4: memref<8x1xf32, #tpu.memory_space<vmem>>, %arg5: memref<1x8x256xf32, #tpu.memory_space<vmem>>) attributes {dimension_semantics = [#tpu.dimension_semantics<parallel>, #tpu.dimension_semantics<parallel>], iteration_bounds = array<i64: 2, 1>, scalar_prefetch = 0 : i64, scratch_operands = 0 : i64, tpu.core_type = #tpu.core_type<tc>, window_params = [{transform_indices = @transform_0, window_bounds = array<i64: 1, 3, 256>}, {pipeline_mode = #tpu.pipeline_mode<synchronous>, transform_indices = @transform_1, window_bounds = array<i64: 8, 3>}, {pipeline_mode = #tpu.pipeline_mode<synchronous>, transform_indices = @transform_2, window_bounds = array<i64: 8, 1>}, {transform_indices = @transform_3, window_bounds = array<i64: 1, 8, 256>}]} {
    %c0 = arith.constant 0 : index
    %c0_0 = arith.constant 0 : index
    %c0_1 = arith.constant 0 : index
    %0 = vector.load %arg2[%c0, %c0_0, %c0_1] : memref<1x3x256xf32, #tpu.memory_space<vmem>>, vector<1x3x256xf32>
    %1 = vector.shape_cast %0 : vector<1x3x256xf32> to vector<3x256xf32>
    %2 = vector.extract_strided_slice %1 {offsets = [0, 0], sizes = [1, 256], strides = [1, 1]} : vector<3x256xf32> to vector<1x256xf32>
    %3 = vector.extract_strided_slice %1 {offsets = [1, 0], sizes = [1, 256], strides = [1, 1]} : vector<3x256xf32> to vector<1x256xf32>
    %4 = arith.subf %3, %2 : vector<1x256xf32>
    %cst = arith.constant 5.880000e-02 : f32
    %5 = vector.broadcast %cst : f32 to vector<1x256xf32>
    %6 = arith.cmpf ogt, %4, %5 : vector<1x256xf32>
    %cst_2 = arith.constant 1.500000e+00 : f32
    %cst_3 = arith.constant 1.000000e+00 : f32
    %7 = vector.broadcast %cst_2 : f32 to vector<1x256xf32>
    %8 = vector.broadcast %cst_3 : f32 to vector<1x256xf32>
    %9 = arith.select %6, %7, %8 : vector<1x256xi1>, vector<1x256xf32>
    %10 = vector.broadcast %9 : vector<1x256xf32> to vector<3x256xf32>
    %11 = arith.mulf %1, %10 : vector<3x256xf32>
    %c0_4 = arith.constant 0 : index
    %c0_5 = arith.constant 0 : index
    %12 = vector.load %arg3[%c0_4, %c0_5] : memref<8x3xf32, #tpu.memory_space<vmem>>, vector<8x3xf32>
    %cst_6 = arith.constant dense<0.000000e+00> : vector<8x256xf32>
    %13 = tpu.matmul %12, %11, %cst_6 {dimension_numbers = #tpu.dot_dimension_numbers<[1], [0], [0], [1], [0, 0, 1, 1], [], []>} : vector<8x3xf32>, vector<3x256xf32>, vector<8x256xf32> -> vector<8x256xf32>
    %c0_7 = arith.constant 0 : index
    %c0_8 = arith.constant 0 : index
    %14 = vector.load %arg4[%c0_7, %c0_8] : memref<8x1xf32, #tpu.memory_space<vmem>>, vector<8x1xf32>
    %15 = vector.broadcast %14 : vector<8x1xf32> to vector<8x256xf32>
    %16 = arith.addf %13, %15 : vector<8x256xf32>
    %17 = arith.negf %16 : vector<8x256xf32>
    %18 = math.exp %17 : vector<8x256xf32>
    %cst_9 = arith.constant 1.000000e+00 : f32
    %19 = vector.broadcast %cst_9 : f32 to vector<8x256xf32>
    %20 = arith.addf %19, %18 : vector<8x256xf32>
    %21 = arith.divf %19, %20 : vector<8x256xf32>
    %22 = arith.mulf %16, %21 : vector<8x256xf32>
    %c0_10 = arith.constant 0 : index
    %c0_11 = arith.constant 0 : index
    %c0_12 = arith.constant 0 : index
    %23 = vector.load %arg5[%c0_10, %c0_11, %c0_12] : memref<1x8x256xf32, #tpu.memory_space<vmem>>, vector<1x8x256xf32>
    %24 = vector.shape_cast %23 : vector<1x8x256xf32> to vector<8x256xf32>
    %25 = vector.shape_cast %22 : vector<8x256xf32> to vector<1x8x256xf32>
    tpu.vector_store %arg5[%c0_10, %c0_11, %c0_12], %25 {strides = array<i32>} : memref<1x8x256xf32, #tpu.memory_space<vmem>>, vector<1x8x256xf32>,
    return
  }
  func.func @transform_0(%arg0: i32, %arg1: i32) -> (i32, i32, i32) {
    %c0_i32 = arith.constant 0 : i32
    %c0_i32_0 = arith.constant 0 : i32
    return %arg0, %c0_i32, %arg1 : i32, i32, i32
  }
  func.func @transform_1(%arg0: i32, %arg1: i32) -> (i32, i32) {
    %c0_i32 = arith.constant 0 : i32
    %c0_i32_0 = arith.constant 0 : i32
    %c0_i32_1 = arith.constant 0 : i32
    return %c0_i32, %c0_i32_0 : i32, i32
  }
  func.func @transform_2(%arg0: i32, %arg1: i32) -> (i32, i32) {
    %c0_i32 = arith.constant 0 : i32
    %c0_i32_0 = arith.constant 0 : i32
    %c0_i32_1 = arith.constant 0 : i32
    return %c0_i32, %c0_i32_0 : i32, i32
  }
  func.func @transform_3(%arg0: i32, %arg1: i32) -> (i32, i32, i32) {
    %c0_i32 = arith.constant 0 : i32
    %c0_i32_0 = arith.constant 0 : i32
    return %arg0, %c0_i32, %arg1 : i32, i32, i32
  }
}

</mosaic_0001>

<llo_original>
// kernel: _g1515_impl.1
$region0: #{_g1515_impl.1}
  #allocation0 [shape = 'u32[]', space=smem, size = 0x4, offset = 0x4, fixed_abs, tag = 'smem constant byte address 0x4 - core index']
  #allocation1 [shape = 'u32[72,128]{1,0:T(1,128)}', space=vmem, size = 0x9000, scoped, tag = 'internal scratch']
  %s0 = inlined_call_operand.vmem [shape: f32[2,3,256], index: 0, kind: input, shape index: {}]
  %s1 = inlined_call_operand.vmem [shape: f32[8,3], index: 1, kind: input, shape index: {}]
  %s2 = inlined_call_operand.vmem [shape: f32[8,1], index: 2, kind: input, shape index: {}]
  %s3 = inlined_call_operand.vmem [shape: f32[2,8,256], index: 3, kind: output, shape index: {}]
  %s4 = sld [smem:[#allocation0]]
  $region45: #{_g1515_impl.1} parent=0
    _
  %s6 = ssub.s32 1, %s4
  %s7 = scalar_select 0, %s6, %s4
  loop: start=0, step=1, limit=4
  $region2: #{_g1515_impl.1} parent=0 // loop_pre_header
    _
  $region3: #{_g1515_impl.1} parent=0 // loop_header
    %s9 = sphi 0, %s13
    %p10 = scmp.ge.s32.totalorder %s9, 4
    %s16 = sphi 0, %s28
    %s17 = sphi 0, %s24
    %s18 = sphi 0, %s16
    %s19 = sphi 0, %s17
    %s20 = sphi 0, %s18
    %s21 = sphi 0, %s19
    %s33 = sphi 0, %s35
    %s36 = sphi 0, %s33
    %s37 = sphi 0, %s36
    %s53 = sphi 0, %s37
    %s57 = sphi 0, %s57
    %s59 = sphi 0, %s57
    %s60 = sphi 0, %s59
    %s74 = sphi 0, %s60
    %s78 = sphi 0, %s78
    %s80 = sphi 0, %s78
    %s81 = sphi 0, %s80
    %s95 = sphi 0, %s81
    %s103 = sphi 0, %s105
    %s106 = sphi 0, %s103
    %s107 = sphi 0, %s106
    %s123 = sphi 0, %s107
  $region4: #{_g1515_impl.1} parent=0 // loop_header_branch
    %12 = sbr.rel (%p10) target = $region8
  $region5: #{_g1515_impl.1} parent=0 // loop_body
    %s14 = ssub.s32 %s9, 1
    %s15 = ssub.s32 %s9, 2
    %s22 = sadd.s32 1, %s17
    %p23 = scmp.ge.s32.totalorder %s22, 1
    %s24 = scalar_select %p23, 0, %s22
    %s25 = sadd.s32 1, %s16
    %s26 = scalar_select %p23, %s25, %s16
    %p27 = scmp.ge.s32.totalorder %s26, 2
    %s28 = scalar_select %p27, 0, %s26
    %s29 = ssub.s32 %s16, %s28
    %s30 = ssub.s32 %s17, %s24
    %s31 = sor.u32 %s29, %s30
    %p32 = scmp.eq.s32.totalorder %s31, 0
    %s34 = sadd.s32 %s33, 1
    %s35 = scalar_select %p32, %s33, %s34
    %p38 = pneg %p32
    %p39 = scmp.eq.s32.totalorder %s9, 1
    %p40 = por %p38, %p39
    %p41 = scmp.ne.s32.totalorder %s33, %s36
    %p42 = scmp.eq.s32.totalorder %s9, 0
    %p43 = por %p41, %p42
    %p44 = scmp.ne.s32.totalorder %s33, %s36
    %p45 = scmp.eq.s32.totalorder %s14, 1
    %p46 = por %p44, %p45
    %p47 = scmp.ne.s32.totalorder %s36, %s37
    %p48 = scmp.eq.s32.totalorder %s14, 0
    %p49 = por %p47, %p48
    %p50 = scmp.ne.s32.totalorder %s36, %s37
    %p51 = scmp.eq.s32.totalorder %s15, 1
    %p52 = por %p50, %p51
    %p54 = scmp.ne.s32.totalorder %s37, %s53
    %p55 = scmp.eq.s32.totalorder %s15, 0
    %p56 = por %p54, %p55
    %s58 = sadd.s32 %s57, 1
    %p61 = scmp.eq.s32.totalorder %s9, 1
    %p62 = scmp.ne.s32.totalorder %s57, %s59
    %p63 = scmp.eq.s32.totalorder %s9, 0
    %p64 = por %p62, %p63
    %p65 = scmp.ne.s32.totalorder %s57, %s59
    %p66 = scmp.eq.s32.totalorder %s14, 1
    %p67 = por %p65, %p66
    %p68 = scmp.ne.s32.totalorder %s59, %s60
    %p69 = scmp.eq.s32.totalorder %s14, 0
    %p70 = por %p68, %p69
    %p71 = scmp.ne.s32.totalorder %s59, %s60
    %p72 = scmp.eq.s32.totalorder %s15, 1
    %p73 = por %p71, %p72
    %p75 = scmp.ne.s32.totalorder %s60, %s74
    %p76 = scmp.eq.s32.totalorder %s15, 0
    %p77 = por %p75, %p76
    %s79 = sadd.s32 %s78, 1
    %p82 = scmp.eq.s32.totalorder %s9, 1
    %p83 = scmp.ne.s32.totalorder %s78, %s80
    %p84 = scmp.eq.s32.totalorder %s9, 0
    %p85 = por %p83, %p84
    %p86 = scmp.ne.s32.totalorder %s78, %s80
    %p87 = scmp.eq.s32.totalorder %s14, 1
    %p88 = por %p86, %p87
    %p89 = scmp.ne.s32.totalorder %s80, %s81
    %p90 = scmp.eq.s32.totalorder %s14, 0
    %p91 = por %p89, %p90
    %p92 = scmp.ne.s32.totalorder %s80, %s81
    %p93 = scmp.eq.s32.totalorder %s15, 1
    %p94 = por %p92, %p93
    %p96 = scmp.ne.s32.totalorder %s81, %s95
    %p97 = scmp.eq.s32.totalorder %s15, 0
    %p98 = por %p96, %p97
    %s99 = ssub.s32 %s16, %s28
    %s100 = ssub.s32 %s17, %s24
    %s101 = sor.u32 %s99, %s100
    %p102 = scmp.eq.s32.totalorder %s101, 0
    %s104 = sadd.s32 %s103, 1
    %s105 = scalar_select %p102, %s103, %s104
    %p108 = pneg %p102
    %p109 = scmp.eq.s32.totalorder %s9, 1
    %p110 = por %p108, %p109
    %p111 = scmp.ne.s32.totalorder %s103, %s106
    %p112 = scmp.eq.s32.totalorder %s9, 0
    %p113 = por %p111, %p112
    %p114 = scmp.ne.s32.totalorder %s103, %s106
    %p115 = scmp.eq.s32.totalorder %s14, 1
    %p116 = por %p114, %p115
    %p117 = scmp.ne.s32.totalorder %s106, %s107
    %p118 = scmp.eq.s32.totalorder %s14, 0
    %p119 = por %p117, %p118
    %p120 = scmp.ne.s32.totalorder %s106, %s107
    %p121 = scmp.eq.s32.totalorder %s15, 1
    %p122 = por %p120, %p121
    %p124 = scmp.ne.s32.totalorder %s107, %s123
    %p125 = scmp.eq.s32.totalorder %s15, 0
    %p126 = por %p124, %p125
    %p127 = scmp.le.s32.totalorder 1, %s9
    %p128 = scmp.lt.s32.totalorder %s9, 3
    %p129 = pnand %p127, %p128
    %p130 = pneg %p129
    // Predicated region
    $region9: #{_g1515_impl.1} parent=5 // pred_check
      _
    $region10: #{_g1515_impl.1} parent=5 // pred_check_branch
      %132 = sbr.rel (%p129) target = $region12
    $region11: #{_g1515_impl.1} parent=5 // pred_region
      %s133 = ssub.s32 %s9, 1
      // Predicated region
      $region13: #{_g1515_impl.1} parent=11 // pred_check
        %p134 = pneg %p70
      $region14: #{_g1515_impl.1} parent=11 // pred_check_branch
        %136 = sbr.rel (%p134) target = $region16
      $region15: #{_g1515_impl.1} parent=11 // pred_region
        _
      $region16: #{_g1515_impl.1} parent=11 // pred_fallthru
        _
      // Predicated region
      $region17: #{_g1515_impl.1} parent=11 // pred_check
        %p137 = pneg %p91
      $region18: #{_g1515_impl.1} parent=11 // pred_check_branch
        %139 = sbr.rel (%p137) target = $region20
      $region19: #{_g1515_impl.1} parent=11 // pred_region
        _
      $region20: #{_g1515_impl.1} parent=11 // pred_fallthru
        _
    $region12: #{_g1515_impl.1} parent=5 // pred_fallthru
      _
    %p140 = scmp.lt.s32.totalorder %s9, 2
    // Predicated region
    $region21: #{_g1515_impl.1} parent=5 // pred_check
      %p141 = pneg %p140
    $region22: #{_g1515_impl.1} parent=5 // pred_check_branch
      %143 = sbr.rel (%p141) target = $region24
    $region23: #{_g1515_impl.1} parent=5 // pred_region
      // Predicated region
      $region25: #{_g1515_impl.1} parent=23 // pred_check
        %p144 = pneg %p43
      $region26: #{_g1515_impl.1} parent=23 // pred_check_branch
        %146 = sbr.rel (%p144) target = $region28
      $region27: #{_g1515_impl.1} parent=23 // pred_region
        %s147 = smul.u32 2, %s17
        %p148 = scmp.lt.s32.totalorder %s16, 1
        %s149 = scalar_select %p148, %s16, 1
        %p150 = scmp.lt.s32.totalorder %s147, 1
        %s151 = scalar_select %p150, %s147, 1
        %s152 = smul.addr %s149, 2
        %s153 = sadd.s32 %s151, %s152
        %s154 = smul.addr %s153, 4
        %s155 = scalar_lea.vmem %s0, %s154
        %s156 = smul.u32 2, %s17
      $region28: #{_g1515_impl.1} parent=23 // pred_fallthru
        _
    $region24: #{_g1515_impl.1} parent=5 // pred_fallthru
      _
    %p157 = scmp.le.s32.totalorder 1, %s9
    %p158 = scmp.lt.s32.totalorder %s9, 3
    %p159 = pnand %p157, %p158
    %p160 = pneg %p159
    // Predicated region
    $region29: #{_g1515_impl.1} parent=5 // pred_check
      _
    $region30: #{_g1515_impl.1} parent=5 // pred_check_branch
      %162 = sbr.rel (%p159) target = $region32
    $region31: #{_g1515_impl.1} parent=5 // pred_region
      %s163 = ssub.s32 %s9, 1
      %s164 = smul.u32 2, %s19
      %p165 = scmp.lt.s32.totalorder %s18, 1
      %s166 = scalar_select %p165, %s18, 1
      %p167 = scmp.lt.s32.totalorder %s164, 1
      %s168 = scalar_select %p167, %s164, 1
      %s169 = smul.addr %s166, 2
      %s170 = sadd.s32 %s168, %s169
      %s171 = smul.addr %s170, 4
      %s172 = scalar_lea.vmem %s0, %s171
      %p173 = pneg %p49
      %p174 = pneg %p46
      %p175 = pneg %p70
      %p176 = pneg %p67
      %p177 = pneg %p91
      %p178 = pneg %p88
      %p179 = pneg %p119
      %p180 = pneg %p116
      %s181 = smul.u32 2, %s19
      %p182 = scmp.lt.s32.totalorder %s18, 1
      %s183 = scalar_select %p182, %s18, 1
      %p184 = scmp.lt.s32.totalorder %s181, 1
      %s185 = scalar_select %p184, %s181, 1
      %s186 = smul.addr %s183, 2
      %s187 = sadd.s32 %s185, %s186
      %s188 = smul.addr %s187, 8
      %s189 = scalar_lea.vmem %s3, %s188
      %s190 = smul.u32 2, %s19
      %p191 = scmp.lt.s32.totalorder %s18, 1
      %s192 = scalar_select %p191, %s18, 1
      %p193 = scmp.lt.s32.totalorder %s190, 1
      %s194 = scalar_select %p193, %s190, 1
      %s195 = smul.addr %s192, 2
      %s196 = sadd.s32 %s194, %s195
      %s197 = smul.addr %s196, 4
      %s198 = scalar_lea.vmem %s0, %s197
      %s199 = smul.u32 2, %s19
      %s200 = smul.u32 2, %s19
      %p201 = scmp.lt.s32.totalorder %s18, 1
      %s202 = scalar_select %p201, %s18, 1
      %p203 = scmp.lt.s32.totalorder %s200, 1
      %s204 = scalar_select %p203, %s200, 1
      %s205 = smul.addr %s202, 2
      %s206 = sadd.s32 %s204, %s205
      %s207 = smul.addr %s206, 8
      %s208 = scalar_lea.vmem %s3, %s207
      %s209 = smul.u32 2, %s19
      %v210 = vld [vmem:[%s198] sm:$0x77]
      %v212 = vrot.slane %v210, 7
      %v214 = vsub.f32 %v210, %v212
      %vm215 = vcmp.gt.f32.partialorder %v214, 0.0588
      %v216 = vsel %vm215, 1.5, 1.0
      %v218 = vperm.slane %v216, 1
      %v219 = vperm.slane %v216, 5
      %v222 = vperm.slane %v218, 1
      %v223 = vperm.slane %v219, 1
      %v226 = vrot.slane %v223, 4
      %vm227 = vcmask 1043456
      %v228 = vsel %vm227, %v222, %v226
      %v230 = vmul.f32 %v210, %v228
      %v231 = vld [vmem:[%s1] sm:$0xff]
      %v232 = vld [vmem:[%s2] sm:$0xff]
      %234 = vset.pattern.permute.xlu0 0
      %235 = vperm.xlu0 %234, %v232
      %v236 = vpop.permute.xlu0 %235
      %239 = vst [vmem:[#allocation1] ss:$2 sm:$0xff] %v230
      %v240 = vld.sshfl [vmem:[#allocation1] sm:$0xff pattern:$0x75316420]
      %v241 = vld.sshfl [vmem:[#allocation1 + $0x8] sm:$0xff pattern:$0x75316420]
      %vm242 = vcmask 23552
      %v244 = vsel %vm242, %v231, 0
      %vm246 = vcmask 1042432
      %v247 = vsel %vm246, %v240, 0
      %v249 = vsel %vm246, %v241, 0
      %251 = vmatpush.msra.mxu0 0.0
      %252 = vmatpush.msra.mxu0 0.0
      %253 = vmatpush.msra.mxu0 0.0
      %254 = vmatpush.msra.mxu0 0.0
      %255 = vmatpush.msra.mxu0 0.0
      %256 = vmatpush.msra.mxu0 0.0
      %257 = vmatpush.msra.mxu0 0.0
      %258 = vmatpush.msra.mxu0 0.0
      %259 = vmatpush.msra.mxu0 0.0
      %260 = vmatpush.msra.mxu0 0.0
      %261 = vmatpush.msra.mxu0 0.0
      %262 = vmatpush.msra.mxu0 0.0
      %263 = vmatpush.msra.mxu0 0.0
      %264 = vmatpush.msra.mxu0 0.0
      %265 = vmatpush.msra.mxu0 0.0
      %266 = vmatpush.msra.mxu0 %v247
      %267 = vmatmul.f32.gmra.mxu0 %v244
      %v268 = vpop.f32.mrf.mxu0
      %v269 = vadd.f32 %v236, %v268
      %270 = vdwg.mxu0
      %271 = vmatpush.msra.mxu0 0.0
      %272 = vmatpush.msra.mxu0 0.0
      %273 = vmatpush.msra.mxu0 0.0
      %274 = vmatpush.msra.mxu0 0.0
      %275 = vmatpush.msra.mxu0 0.0
      %276 = vmatpush.msra.mxu0 0.0
      %277 = vmatpush.msra.mxu0 0.0
      %278 = vmatpush.msra.mxu0 0.0
      %279 = vmatpush.msra.mxu0 0.0
      %280 = vmatpush.msra.mxu0 0.0
      %281 = vmatpush.msra.mxu0 0.0
      %282 = vmatpush.msra.mxu0 0.0
      %283 = vmatpush.msra.mxu0 0.0
      %284 = vmatpush.msra.mxu0 0.0
      %285 = vmatpush.msra.mxu0 0.0
      %286 = vmatpush.msra.mxu0 %v249
      %287 = vmatmul.f32.gmra.mxu0 %v244
      %v288 = vpop.f32.mrf.mxu0
      %v289 = vadd.f32 %v236, %v288
      %290 = vdwg.mxu0
      %v291 = vxor.u32 %v269, 2147483648
      %v292 = vxor.u32 %v289, 2147483648
      %v293 = vmul.f32 %v291, 1.442695
      %v294 = vpow.pop %v293
      %v295 = vmul.f32 %v292, 1.442695
      %v296 = vpow.pop %v295
      %v297 = vadd.f32 %v294, 1.0
      %v298 = vadd.f32 %v296, 1.0
      %v299 = vrcp.pop %v297
      %v300 = vmul.f32 %v297, %v299
      %v301 = vsub.f32 1.0, %v300
      %v302 = vmul.f32 %v299, %v301
      %v303 = vadd.f32 %v299, %v302
      %vm304 = vweird.f32 %v297
      %vm305 = vweird.f32 %v299
      %vm306 = vmor %vm304, %vm305
      %v307 = vsel %vm306, %v299, %v303
      %v308 = vand.u32 2147483647, %v297
      %vm309 = vcmp.eq.f32.partialorder %v308, 8.507059e+37
      %v310 = vand.u32 %v297, 2147483648
      %v311 = vor.u32 1.1754944e-38, %v310
      %v312 = vsel %vm309, %v311, %v307
      %v313 = vmul.f32 1.0, %v312
      %v314 = vrcp.pop %v298
      %v315 = vmul.f32 %v298, %v314
      %v316 = vsub.f32 1.0, %v315
      %v317 = vmul.f32 %v314, %v316
      %v318 = vadd.f32 %v314, %v317
      %vm319 = vweird.f32 %v298
      %vm320 = vweird.f32 %v314
      %vm321 = vmor %vm319, %vm320
      %v322 = vsel %vm321, %v314, %v318
      %v323 = vand.u32 2147483647, %v298
      %vm324 = vcmp.eq.f32.partialorder %v323, 8.507059e+37
      %v325 = vand.u32 %v298, 2147483648
      %v326 = vor.u32 1.1754944e-38, %v325
      %v327 = vsel %vm324, %v326, %v322
      %v328 = vmul.f32 1.0, %v327
      %v329 = vmul.f32 %v269, %v313
      %v330 = vmul.f32 %v289, %v328
      %331 = vst [vmem:[%s208] sm:$0xff] %v329
      %332 = vst [vmem:[%s208 + $0x8] sm:$0xff] %v330
      %s333 = smul.u32 2, %s19
      %p334 = scmp.lt.s32.totalorder %s18, 1
      %s335 = scalar_select %p334, %s18, 1
      %p336 = scmp.lt.s32.totalorder %s333, 1
      %s337 = scalar_select %p336, %s333, 1
      %s338 = smul.addr %s335, 2
      %s339 = sadd.s32 %s337, %s338
      %s340 = smul.addr %s339, 8
      %s341 = scalar_lea.vmem %s3, %s340
      // Predicated region
      $region33: #{_g1515_impl.1} parent=31 // pred_check
        %p342 = pneg %p116
      $region34: #{_g1515_impl.1} parent=31 // pred_check_branch
        %344 = sbr.rel (%p342) target = $region36
      $region35: #{_g1515_impl.1} parent=31 // pred_region
        %s345 = smul.u32 2, %s19
      $region36: #{_g1515_impl.1} parent=31 // pred_fallthru
        _
    $region32: #{_g1515_impl.1} parent=5 // pred_fallthru
      _
    %p346 = scmp.le.s32.totalorder 2, %s9
    // Predicated region
    $region37: #{_g1515_impl.1} parent=5 // pred_check
      %p347 = pneg %p346
    $region38: #{_g1515_impl.1} parent=5 // pred_check_branch
      %349 = sbr.rel (%p347) target = $region40
    $region39: #{_g1515_impl.1} parent=5 // pred_region
      %s350 = ssub.s32 %s9, 2
      // Predicated region
      $region41: #{_g1515_impl.1} parent=39 // pred_check
        %p351 = pneg %p122
      $region42: #{_g1515_impl.1} parent=39 // pred_check_branch
        %353 = sbr.rel (%p351) target = $region44
      $region43: #{_g1515_impl.1} parent=39 // pred_region
        %s354 = smul.u32 2, %s21
        %p355 = scmp.lt.s32.totalorder %s20, 1
        %s356 = scalar_select %p355, %s20, 1
        %p357 = scmp.lt.s32.totalorder %s354, 1
        %s358 = scalar_select %p357, %s354, 1
        %s359 = smul.addr %s356, 2
        %s360 = sadd.s32 %s358, %s359
        %s361 = smul.addr %s360, 8
        %s362 = scalar_lea.vmem %s3, %s361
      $region44: #{_g1515_impl.1} parent=39 // pred_fallthru
        _
    $region40: #{_g1515_impl.1} parent=5 // pred_fallthru
      _
  $region6: #{_g1515_impl.1} parent=0 // loop_footer
    %s13 = sadd.s32 1, %s9
  $region7: #{_g1515_impl.1} parent=0 // loop_footer_branch
    %8 = sbr.rel target = $region3
  $region8: #{_g1515_impl.1} parent=0 // loop_exit
    _

</llo_original>
